<compile_context>
chip_gen: v7x
topology: tpu7x:2x2x1
jax: 0.10.0
libtpu: 0.0.40
codegen_flags: <defaults>
</compile_context>

<pallas_src>
import math

import numpy as np
import jax
import jax.numpy as jnp
from jax.experimental import pallas as pl
from jax.experimental.pallas import tpu as pltpu

TIME_DIM = 64  # matches the PyTorch module


def _time_emb_kernel(tab_ref, t_ref, o_ref):
    # tab_ref: (2, 128) f32  -- row 0: per-lane frequency, row 1: per-lane phase offset
    # t_ref:   (TR, pack) f32 -- `pack` timesteps packed per output row
    # o_ref:   (TR, 128) f32  -- lane-dense packed embedding
    freq = tab_ref[0:1, :]                       # (1, 128)
    off = tab_ref[1:2, :]                        # (1, 128)
    pack = t_ref.shape[-1]
    lanes = o_ref.shape[-1]
    td = lanes // pack                           # = time_dim
    lane = jax.lax.broadcasted_iota(jnp.int32, (1, lanes), 1)
    # Per output lane, pick the timestep of the packed slot it belongs to.
    t_sel = t_ref[:, 0:1]                        # (TR, 1)
    for s in range(1, pack):                     # static tiny loop (pack == 2 for time_dim 64)
        t_sel = jnp.where(lane >= s * td, t_ref[:, s:s + 1], t_sel)
    # cos(x) == sin(x + pi/2): one dense full-width sin, one dense store.
    o_ref[...] = jnp.sin(t_sel * freq + off)


def sinusoidal_time_embedding(t, time_dim=TIME_DIM, row_tile=1024):
    """t: (B,) numeric array. Returns (B, time_dim) float32 = [sin | cos] embedding."""
    assert time_dim % 2 == 0 and time_dim >= 4, "time_dim must be even and >= 4"
    assert 128 % time_dim == 0, "lane-dense packing assumes time_dim divides 128"
    half = time_dim // 2
    pack = 128 // time_dim                       # timesteps packed per 128-lane row

    # Host-precomputed constant tables (exact; no in-kernel exp / iota over freqs).
    emb = math.log(10000.0) / (half - 1)
    freqs = np.exp(np.arange(half, dtype=np.float64) * -emb).astype(np.float32)
    freq_row = np.tile(np.concatenate([freqs, freqs]), pack)                    # (128,)
    off_row = np.tile(
        np.concatenate([np.zeros(half, np.float32),
                        np.full(half, np.pi / 2, np.float32)]), pack)           # (128,)
    table = jnp.asarray(np.stack([freq_row, off_row]).astype(np.float32))       # (2, 128)

    b = t.shape[0]
    r = pl.cdiv(b, pack)                         # packed output rows
    if r <= row_tile:
        tr, r_pad = r, r                         # single block == full array (no 8-row constraint)
    else:
        tr = row_tile                            # multiple of 8; pipelined over the grid
        r_pad = pl.cdiv(r, tr) * tr

    t_flat = jnp.zeros((r_pad * pack,), jnp.float32).at[:b].set(t.astype(jnp.float32))
    t2d = t_flat.reshape(r_pad, pack)

    out_packed = pl.pallas_call(
        _time_emb_kernel,
        out_shape=jax.ShapeDtypeStruct((r_pad, 128), jnp.float32),
        grid=(r_pad // tr,),
        in_specs=[pl.BlockSpec((2, 128), lambda i: (0, 0)),       # constant table, stays resident
                  pl.BlockSpec((tr, pack), lambda i: (i, 0))],
        out_specs=pl.BlockSpec((tr, 128), lambda i: (i, 0)),
        compiler_params=pltpu.CompilerParams(dimension_semantics=("parallel",)),
    )(table, t2d)

    # Row-major unpack back to (B, time_dim); free layout plumbing.
    return out_packed.reshape(r_pad * pack, time_dim)[:b]
    # TODO(synk): at real call sites, fuse this into the downstream time-MLP matmul
    # instead of round-tripping the tiny embedding through HBM.


def _reference(t, time_dim=TIME_DIM):
    half = time_dim // 2
    emb = math.log(10000.0) / (half - 1)
    freqs = jnp.asarray(np.exp(np.arange(half, dtype=np.float64) * -emb).astype(np.float32))
    phase = t.astype(jnp.float32)[:, None] * freqs[None, :]
    return jnp.concatenate([jnp.sin(phase), jnp.cos(phase)], axis=-1)


if __name__ == "__main__":
    key = jax.random.PRNGKey(0)
    for b in (8, 37):                           # even and odd batch (exercises padding path)
        kb = jax.random.fold_in(key, b)
        # Integer diffusion timesteps, typical usage of this module.
        t = jax.random.randint(kb, (b,), 0, 1000, dtype=jnp.int32)

        out = jax.block_until_ready(sinusoidal_time_embedding(t, TIME_DIM))
        ref = _reference(t, TIME_DIM)

        assert out.shape == (b, TIME_DIM), out.shape
        assert out.dtype == jnp.float32, out.dtype
        # cos is computed as sin(x + pi/2) and the TPU sine implementation may differ
        # from XLA's by a few 1e-5 at |phase| ~ 1e3; tolerance still catches real bugs
        # (swapped halves / wrong freqs give O(1) errors).
        err = float(jnp.max(jnp.abs(out - ref)))
        assert jnp.allclose(out, ref, atol=5e-3, rtol=0.0), f"mismatch, max abs err = {err}"

    print("KERNEL_OK")
</pallas_src>

<mosaic_0001>
module attributes {stable_mosaic.version = 11 : i64} {
  func.func @_time_emb_kernel(%arg0: i32, %arg1: memref<2x128xf32, #tpu.memory_space<vmem>>, %arg2: memref<4x2xf32, #tpu.memory_space<vmem>>, %arg3: memref<4x128xf32, #tpu.memory_space<vmem>>) attributes {dimension_semantics = [#tpu.dimension_semantics<parallel>], iteration_bounds = array<i64: 1>, scalar_prefetch = 0 : i64, scratch_operands = 0 : i64, tpu.core_type = #tpu.core_type<tc>, window_params = [{pipeline_mode = #tpu.pipeline_mode<synchronous>, transform_indices = @transform_0, window_bounds = array<i64: 2, 128>}, {transform_indices = @transform_1, window_bounds = array<i64: 4, 2>}, {transform_indices = @transform_2, window_bounds = array<i64: 4, 128>}]} {
    %c0 = arith.constant 0 : index
    %c0_0 = arith.constant 0 : index
    %0 = vector.load %arg1[%c0, %c0_0] : memref<2x128xf32, #tpu.memory_space<vmem>>, vector<1x128xf32>
    %c1 = arith.constant 1 : index
    %c0_1 = arith.constant 0 : index
    %1 = vector.load %arg1[%c1, %c0_1] : memref<2x128xf32, #tpu.memory_space<vmem>>, vector<1x128xf32>
    %2 = tpu.iota {dimensions = array<i32: 1>} : vector<1x128xi32>
    %c0_2 = arith.constant 0 : index
    %c0_3 = arith.constant 0 : index
    %3 = vector.load %arg2[%c0_2, %c0_3] : memref<4x2xf32, #tpu.memory_space<vmem>>, vector<4x1xf32>
    %c64_i32 = arith.constant 64 : i32
    %4 = vector.broadcast %c64_i32 : i32 to vector<1x128xi32>
    %5 = arith.cmpi sge, %2, %4 : vector<1x128xi32>
    %c0_4 = arith.constant 0 : index
    %c1_5 = arith.constant 1 : index
    %6 = vector.load %arg2[%c0_4, %c1_5] : memref<4x2xf32, #tpu.memory_space<vmem>>, vector<4x1xf32>
    %7 = vector.shape_cast %5 : vector<1x128xi1> to vector<1x128xi1>
    %8 = vector.broadcast %7 : vector<1x128xi1> to vector<4x128xi1>
    %9 = vector.shape_cast %6 : vector<4x1xf32> to vector<4x1xf32>
    %10 = vector.broadcast %9 : vector<4x1xf32> to vector<4x128xf32>
    %11 = vector.shape_cast %3 : vector<4x1xf32> to vector<4x1xf32>
    %12 = vector.broadcast %11 : vector<4x1xf32> to vector<4x128xf32>
    %13 = arith.select %8, %10, %12 : vector<4x128xi1>, vector<4x128xf32>
    %14 = vector.broadcast %0 : vector<1x128xf32> to vector<4x128xf32>
    %15 = arith.mulf %13, %14 : vector<4x128xf32>
    %16 = vector.broadcast %1 : vector<1x128xf32> to vector<4x128xf32>
    %17 = arith.addf %15, %16 : vector<4x128xf32>
    %18 = math.sin %17 : vector<4x128xf32>
    %c0_6 = arith.constant 0 : index
    %c0_7 = arith.constant 0 : index
    %19 = vector.load %arg3[%c0_6, %c0_7] : memref<4x128xf32, #tpu.memory_space<vmem>>, vector<4x128xf32>
    tpu.vector_store %arg3[%c0_6, %c0_7], %18 {strides = array<i32>} : memref<4x128xf32, #tpu.memory_space<vmem>>, vector<4x128xf32>,
    return
  }
  func.func @transform_0(%arg0: i32) -> (i32, i32) {
    %c0_i32 = arith.constant 0 : i32
    %c0_i32_0 = arith.constant 0 : i32
    %c0_i32_1 = arith.constant 0 : i32
    return %c0_i32, %c0_i32_0 : i32, i32
  }
  func.func @transform_1(%arg0: i32) -> (i32, i32) {
    %c0_i32 = arith.constant 0 : i32
    %c0_i32_0 = arith.constant 0 : i32
    return %arg0, %c0_i32 : i32, i32
  }
  func.func @transform_2(%arg0: i32) -> (i32, i32) {
    %c0_i32 = arith.constant 0 : i32
    %c0_i32_0 = arith.constant 0 : i32
    return %arg0, %c0_i32 : i32, i32
  }
}

</mosaic_0001>

<llo_original>
// kernel: tpu_custom_call.1
$region0: #{tpu_custom_call.1}
  #allocation0 [shape = 'u32[]', space=smem, size = 0x4, offset = 0x4, fixed_abs, tag = 'smem constant byte address 0x4 - core index']
  #allocation1 [shape = 'u32[144,128]{1,0:T(1,128)}', space=vmem, size = 0x12000, scoped, tag = 'internal scratch']
  %s0 = inlined_call_operand.vmem [shape: f32[2,128], index: 0, kind: input, shape index: {}]
  %s1 = inlined_call_operand.vmem [shape: f32[4,2], index: 1, kind: input, shape index: {}]
  %s2 = inlined_call_operand.hbm [shape: f32[4,128], index: 2, kind: output, shape index: {}]
  %s3 = sld [smem:[#allocation0]]
  $region18: #{tpu_custom_call.1} parent=0
    _
  %s5 = ssub.s32 1, %s3
  %s6 = scalar_select 0, %s5, %s3
  $region1: #{tpu_custom_call.1} parent=0
    #allocation2 [shape = 'u8[2048]{0}', space=vmem, size = 0x800, scoped, tag = 'output window, operand 0, single buffered']
    #allocation3 [shape = 's32[1]{0}', space=sflag, size = 0x4, scoped, tag = 'scoped memory for tpu_custom_call.1']
    %7 = vsyncpa [#allocation3], 0
    // Predicated region
    $region2: #{tpu_custom_call.1} parent=1 // pred_check
      _
    $region3: #{tpu_custom_call.1} parent=1 // pred_check_branch
      %9 = sbr.rel (0) target = $region5
    $region4: #{tpu_custom_call.1} parent=1 // pred_region
      _
    $region5: #{tpu_custom_call.1} parent=1 // pred_fallthru
      _
    // Predicated region
    $region6: #{tpu_custom_call.1} parent=1 // pred_check
      _
    $region7: #{tpu_custom_call.1} parent=1 // pred_check_branch
      %11 = sbr.rel (0) target = $region9
    $region8: #{tpu_custom_call.1} parent=1 // pred_region
      _
    $region9: #{tpu_custom_call.1} parent=1 // pred_fallthru
      _
    %v12 = vld [vmem:[%s0] sm:$0x1]
    %v13 = vld [vmem:[%s0 + $0x1] sm:$0x1]
    %v14 = vlaneseq
    %v15 = vand.u32 %v14, 127
    %v16 = vld [vmem:[%s1] sm:$0xf]
    %vm17 = vcmp.ge.s32.totalorder %v15, 64
    %v18 = vsel %vm17, 1, 0
    %vm19 = vcmp.eq.s32.totalorder %v18, 1
    %21 = vset.pattern.permute.xlu0 1
    %22 = vperm.xlu0 %21, %v16
    %v23 = vpop.permute.xlu0 %22
    %25 = vset.pattern.permute.xlu0 0
    %26 = vperm.xlu0 %25, %v16
    %v27 = vpop.permute.xlu0 %26
    %v29 = vsel %vm19, %v23, %v27
    %v30 = vlaneseq
    %v31 = vshrl.u32 %v30, 7
    %v32 = vsub.s32 0, %v31
    %v33 = vrot.slane %v12, %v32
    %v34 = vmul.f32 %v29, %v33
    %v35 = vlaneseq
    %v36 = vshrl.u32 %v35, 7
    %v37 = vsub.s32 0, %v36
    %v38 = vrot.slane %v13, %v37
    %v39 = vadd.f32 %v34, %v38
    %v40 = vand.u32 2147483647, %v39
    %vm41 = vcmp.le.f32.partialorder %v40, 0.7853982
    %vm42 = vcmp.lt.s32.totalorder %v39, 0
    %v43 = vand.u32 %v39, 2139095040
    %v44 = vshrl.u32 %v43, 23
    %v45 = vsub.s32 %v44, 127
    %v46 = vand.u32 2147483647, %v39
    %v47 = vand.u32 %v46, 8388607
    %v48 = vor.u32 %v47, 8388608
    %v49 = vsub.s32 0, %v48
    %v50 = vadd.s32 %v45, 1
    %vm51 = vcmp.gt.s32.totalorder %v50, 0
    %v52 = vsel %vm51, %v50, 0
    %v53 = vshrl.u32 %v52, 5
    %v54 = vand.u32 %v52, 31
    %v55 = vsub.s32 32, %v54
    %v56 = vshrl.u32 683565275, %v55
    %v57 = vshll.u32 683565275, %v54
    %v58 = vshrl.u32 2475754826, %v55
    %v59 = vor.u32 %v57, %v58
    %v60 = vshll.u32 2475754826, %v54
    %v61 = vshrl.u32 2131351028, %v55
    %v62 = vor.u32 %v60, %v61
    %v63 = vshll.u32 2131351028, %v54
    %v64 = vshrl.u32 2102212464, %v55
    %v65 = vor.u32 %v63, %v64
    %v66 = vshll.u32 2102212464, %v54
    %v67 = vshrl.u32 920167782, %v55
    %v68 = vor.u32 %v66, %v67
    %v69 = vshll.u32 920167782, %v54
    %v70 = vshrl.u32 1326507024, %v55
    %v71 = vor.u32 %v69, %v70
    %vm72 = vcmp.lt.s32.totalorder %v53, 1
    %vm73 = vcmp.lt.s32.totalorder %v53, 2
    %vm74 = vcmp.lt.s32.totalorder %v53, 3
    %vm75 = vcmp.lt.s32.totalorder %v53, 4
    %v76 = vsel %vm72, %v56, %v59
    %v77 = vsel %vm75, %v65, 2102212464
    %v78 = vsel %vm74, %v62, %v77
    %v79 = vsel %vm73, %v76, %v78
    %v80 = vsel %vm72, %v59, %v62
    %v81 = vsel %vm75, %v68, 920167782
    %v82 = vsel %vm74, %v65, %v81
    %v83 = vsel %vm73, %v80, %v82
    %v84 = vsel %vm72, %v62, %v65
    %v85 = vsel %vm75, %v71, 1326507024
    %v86 = vsel %vm74, %v68, %v85
    %v87 = vsel %vm73, %v84, %v86
    %v88 = vshll.u32 %v48, 8
    %v89 = vmul.u32.u64.compose %v88, %v87
    %v90 = vextract.low.u32 %v89
    %v91 = vextract.high.u32 %v89
    %v92 = vmul.u32.u64.compose %v88, %v83
    %v93 = vextract.low.u32 %v92
    %v94 = vextract.high.u32 %v92
    %v95 = vmul.u32 %v88, %v79
    %v96 = vadd.s32 %v91, %v93
    %vm97 = vc.u32 %v91, %v93
    %v98 = vadd.s32 %v94, 1
    %v99 = vsel %vm97, %v98, %v94
    %v100 = vadd.s32 %v95, %v99
    %v101 = vadd.s32 %v100, 536870912
    %v102 = vshrl.u32 %v101, 30
    %v103 = vshll.u32 %v102, 30
    %v104 = vsub.s32 %v100, %v103
    %vm105 = vcmp.lt.s32.totalorder %v104, 0
    %v106 = vsub.s32 0, %v104
    %v107 = vsel %vm105, %v106, %v104
    %v108 = vclz %v107
    %v109 = vsub.s32 %v108, 2
    %vm110 = vcmp.gt.s32.totalorder 0, %v109
    %v111 = vsel %vm110, 0, %v109
    %v112 = vsub.s32 32, %v111
    %v113 = vshll.u32 %v104, %v111
    %v114 = vshrl.u32 %v96, %v112
    %v115 = vor.u32 %v113, %v114
    %v116 = vsub.s32 4294967266, %v111
    %v117 = vadd.s32 %v116, 127
    %v118 = vshll.u32 %v117, 23
    %v119 = vor.u32 4788187, %v118
    %v120 = vand.u32 2147483647, %v119
    %v122 = vcvt.s32.f32 %v115
    %v123 = vmul.f32 %v122, %v120
    %v124 = vxor.u32 %v123, 2147483648
    %v125 = vsel %vm42, %v124, %v123
    %v126 = vsub.s32 4, %v102
    %v127 = vsel %vm42, %v126, %v102
    %v128 = vsel %vm41, %v39, %v125
    %v129 = vsel %vm41, 0, %v127
    %v130 = vcosq.f32.pop %v128
    %v131 = vsinq.f32.pop %v128
    %vm132 = vweird.f32 %v39
    %v133 = vadd.s32 %v129, 3
    %v134 = vand.u32 %v133, 3
    %vm135 = vcmp.lt.s32.totalorder %v134, 2
    %vm136 = vcmp.eq.s32.totalorder %v134, 0
    %v137 = vxor.u32 %v131, 2147483648
    %v138 = vsel %vm136, %v130, %v137
    %vm139 = vcmp.eq.s32.totalorder %v134, 2
    %v140 = vxor.u32 %v130, 2147483648
    %v141 = vsel %vm139, %v140, %v131
    %v142 = vsel %vm135, %v138, %v141
    %v143 = vsel %vm132, nan, %v142
    %144 = vst [vmem:[#allocation2] sm:$0xf] %v143
    // Predicated region
    $region10: #{tpu_custom_call.1} parent=1 // pred_check
      _
    $region11: #{tpu_custom_call.1} parent=1 // pred_check_branch
      %146 = sbr.rel (0) target = $region13
    $region12: #{tpu_custom_call.1} parent=1 // pred_region
      %s148 = ssub.s32 64, 64
      %149 = vsyncadd [#allocation3], %s148
      %s151 = sshll.u32 [#allocation2], 4
      %s152 = int_to_ptr.vmem [resolvable:$true] %s151
      %154 = dma.vmem_to_hbm [thread:$0]  %s152, 64, %s2, [#allocation3]
    $region13: #{tpu_custom_call.1} parent=1 // pred_fallthru
      _
    // Predicated region
    $region14: #{tpu_custom_call.1} parent=1 // pred_check
      _
    $region15: #{tpu_custom_call.1} parent=1 // pred_check_branch
      %156 = sbr.rel (0) target = $region17
    $region16: #{tpu_custom_call.1} parent=1 // pred_region
      %157 = dma.done [#allocation3], 64
    $region17: #{tpu_custom_call.1} parent=1 // pred_fallthru
      _
    %158 = vsyncpa [#allocation3], 1

</llo_original>
